<compile_context>
chip_gen: v5e
topology: v5e:2x2
jax: 0.10.0
libtpu: 0.0.40
codegen_flags: <defaults>
</compile_context>

<pallas_src>
import jax
import jax.numpy as jnp
from jax.experimental import pallas as pl
from jax.experimental.pallas import tpu as pltpu


def dae_forward_kernel(v_ref, we_ref, hb_ref, wdT_ref, vb_ref, out_ref, h_ref):
    # Encode once per batch tile (only at the first output-N step).
    # NOTE: the reference module's encode() computes sigmoid(h) but returns the
    # PRE-activation, so no nonlinearity is applied here (intentional).
    @pl.when(pl.program_id(1) == 0)
    def _():
        h = jnp.dot(v_ref[...], we_ref[...], preferred_element_type=jnp.float32)
        h_ref[...] = (h + hb_ref[...]).astype(h_ref.dtype)

    # Decode tile j: out = h @ W_decoder.T + v_bias (decoder pre-transposed in wrapper).
    out = jnp.dot(h_ref[...], wdT_ref[...], preferred_element_type=jnp.float32)
    out_ref[...] = (out + vb_ref[...]).astype(out_ref.dtype)


def pretraining_dae_forward(v, W_encoder, h_bias, W_decoder, v_bias, *,
                            compute_dtype=jnp.bfloat16, out_dtype=jnp.float32,
                            block_batch=512):
    """v: (B, visible_dim) -> (B, visible_dim) in `out_dtype` (default float32)."""
    B, V = v.shape
    Vw, H = W_encoder.shape
    assert Vw == V and W_decoder.shape == (V, H)
    assert h_bias.shape == (H,) and v_bias.shape == (V,)

    cdt = jnp.dtype(compute_dtype) if compute_dtype is not None else jnp.dtype(v.dtype)
    odt = jnp.dtype(out_dtype)
    ic, oc = cdt.itemsize, odt.itemsize

    # One-time weight prep (cast, transpose, lane-dense zero padding).
    v_c = v.astype(cdt)
    We = W_encoder.astype(cdt)                       # (V, H)
    WdT = W_decoder.T.astype(cdt)                    # (H, V) - no in-kernel transpose
    hb2 = h_bias.reshape(1, H).astype(jnp.float32)
    vb2 = v_bias.reshape(1, V).astype(jnp.float32)

    Hp = pl.cdiv(H, 128) * 128
    Vp = pl.cdiv(V, 128) * 128
    if Hp != H:
        We = jnp.pad(We, ((0, 0), (0, Hp - H)))
        hb2 = jnp.pad(hb2, ((0, 0), (0, Hp - H)))
        WdT = jnp.pad(WdT, ((0, Hp - H), (0, 0)))
    if Vp != V:
        WdT = jnp.pad(WdT, ((0, 0), (0, Vp - V)))
        vb2 = jnp.pad(vb2, ((0, 0), (0, Vp - V)))

    # Generation-aware VMEM budget (v7x has only 64 MiB per TensorCore).
    try:
        vmem_cap = int(pltpu.get_tpu_info().vmem_capacity_bytes)
    except Exception:
        vmem_cap = 64 * 1024 * 1024
    budget = int(vmem_cap * 0.8)

    # Encoder weights are always grid-constant -> resident, single-buffered.
    enc_res = V * Hp * ic + Hp * 4
    dec_full = Hp * Vp * ic + Vp * 4

    if enc_res + dec_full <= budget // 2:
        TN, grid_n = Vp, 1
        dec_res = dec_full                           # resident, single-buffered
    else:
        TN = 256
        while TN * 2 < Vp and enc_res + 2 * (Hp * (TN * 2) * ic + (TN * 2) * 4) <= budget // 2:
            TN *= 2
        TN = min(TN, Vp)
        grid_n = pl.cdiv(Vp, TN)
        dec_res = 2 * (Hp * TN * ic + TN * 4)        # streamed, double-buffered
    weights_bytes = enc_res + dec_res

    def act_bytes(tm):
        # double-buffered v / out tiles + h scratch + in-kernel f32 intermediates
        return (2 * tm * V * ic + 2 * tm * TN * oc
                + tm * Hp * ic + tm * Hp * 4 + tm * TN * 4)

    TM = int(block_batch)
    while TM > 16 and weights_bytes + act_bytes(TM) > budget:
        TM //= 2
    if B <= TM:
        if B >= 32:
            # >= 2 batch tiles so both TensorCores get work (v7x megacore).
            TM = max(16, ((B + 1) // 2 + 15) // 16 * 16)
        else:
            TM = B                                   # full-dim block (always legal)
    else:
        TM = max(16, (TM // 16) * 16)
    grid_m = pl.cdiv(B, TM)

    need = weights_bytes + act_bytes(TM)
    cp_kwargs = dict(dimension_semantics=("parallel", "arbitrary"))
    if need > 16 * 1024 * 1024:
        cp_kwargs["vmem_limit_bytes"] = int(min(budget, need * 6 // 5))

    cost = pl.CostEstimate(
        flops=4 * B * V * H,
        transcendentals=0,
        bytes_accessed=B * V * ic + B * Vp * oc + V * Hp * ic + Hp * Vp * ic + Hp * 4 + Vp * 4,
    )

    def run(single_buffer):
        def spec(shape, index_map, resident):
            if resident and single_buffer:
                return pl.BlockSpec(shape, index_map, pipeline_mode=pl.Buffered(1))
            return pl.BlockSpec(shape, index_map)

        dec_resident = grid_n == 1
        in_specs = [
            pl.BlockSpec((TM, V), lambda i, j: (i, 0)),          # v: batch-tiled
            spec((V, Hp), lambda i, j: (0, 0), True),             # W_encoder: resident
            spec((1, Hp), lambda i, j: (0, 0), True),             # h_bias:    resident
            spec((Hp, TN), lambda i, j: (0, j), dec_resident),    # W_dec.T
            spec((1, TN), lambda i, j: (0, j), dec_resident),     # v_bias
        ]
        return pl.pallas_call(
            dae_forward_kernel,
            out_shape=jax.ShapeDtypeStruct((B, Vp), odt),
            grid=(grid_m, grid_n),
            in_specs=in_specs,
            out_specs=pl.BlockSpec((TM, TN), lambda i, j: (i, j)),
            scratch_shapes=[pltpu.VMEM((TM, Hp), cdt)],
            compiler_params=pltpu.CompilerParams(**cp_kwargs),
            cost_estimate=cost,
        )(v_c, We, hb2, WdT, vb2)

    try:
        out = jax.block_until_ready(run(True))
    except Exception:
        # Fallback if pipeline_mode=pl.Buffered(1) is unsupported in this JAX build.
        out = run(False)

    if Vp != V:
        out = out[:, :V]
    return out


if __name__ == "__main__":
    # Deterministic synthetic parameters (mirrors __init__: randn * 0.1, zero biases).
    visible_dim = 32
    hidden_dim = 16
    batch = 8

    key = jax.random.PRNGKey(0)
    k_v, k_we, k_wd = jax.random.split(key, 3)

    v = jax.random.normal(k_v, (batch, visible_dim), dtype=jnp.float32)
    W_encoder = 0.1 * jax.random.normal(k_we, (visible_dim, hidden_dim), dtype=jnp.float32)
    W_decoder = 0.1 * jax.random.normal(k_wd, (visible_dim, hidden_dim), dtype=jnp.float32)
    h_bias = jnp.zeros((hidden_dim,), dtype=jnp.float32)
    v_bias = jnp.zeros((visible_dim,), dtype=jnp.float32)

    # Pure-JAX reference: encode() returns the PRE-activation (sigmoid is discarded).
    h_ref = v @ W_encoder + h_bias
    ref = h_ref @ W_decoder.T + v_bias

    # Bit-accurate f32 compute path.
    out_f32 = jax.block_until_ready(
        pretraining_dae_forward(v, W_encoder, h_bias, W_decoder, v_bias,
                                compute_dtype=jnp.float32))
    assert out_f32.shape == (batch, visible_dim)
    assert jnp.allclose(out_f32, ref, atol=1e-5, rtol=1e-5)

    # Default bf16-compute path (f32 accumulation) - looser tolerance.
    out_bf16 = jax.block_until_ready(
        pretraining_dae_forward(v, W_encoder, h_bias, W_decoder, v_bias))
    assert out_bf16.shape == (batch, visible_dim)
    assert jnp.allclose(out_bf16, ref, atol=3e-2, rtol=3e-2)

    print("KERNEL_OK")
</pallas_src>

<mosaic_0001>
module attributes {stable_mosaic.version = 11 : i64} {
  func.func @dae_forward_kernel(%arg0: i32, %arg1: i32, %arg2: memref<8x32xf32, #tpu.memory_space<vmem>>, %arg3: memref<32x128xf32, #tpu.memory_space<vmem>>, %arg4: memref<1x128xf32, #tpu.memory_space<vmem>>, %arg5: memref<128x128xf32, #tpu.memory_space<vmem>>, %arg6: memref<1x128xf32, #tpu.memory_space<vmem>>, %arg7: memref<8x128xf32, #tpu.memory_space<vmem>>, %arg8: memref<8x128xf32, #tpu.memory_space<vmem>>) attributes {dimension_semantics = [#tpu.dimension_semantics<parallel>, #tpu.dimension_semantics<arbitrary>], iteration_bounds = array<i64: 1, 1>, scalar_prefetch = 0 : i64, scratch_operands = 1 : i64, tpu.core_type = #tpu.core_type<tc>, window_params = [{transform_indices = @transform_0, window_bounds = array<i64: 8, 32>}, {pipeline_mode = #tpu.pipeline_mode<synchronous>, transform_indices = @transform_1, window_bounds = array<i64: 32, 128>}, {pipeline_mode = #tpu.pipeline_mode<synchronous>, transform_indices = @transform_2, window_bounds = array<i64: 1, 128>}, {pipeline_mode = #tpu.pipeline_mode<synchronous>, transform_indices = @transform_3, window_bounds = array<i64: 128, 128>}, {pipeline_mode = #tpu.pipeline_mode<synchronous>, transform_indices = @transform_4, window_bounds = array<i64: 1, 128>}, {transform_indices = @transform_5, window_bounds = array<i64: 8, 128>}]} {
    %c0_i32 = arith.constant 0 : i32
    %0 = arith.cmpi eq, %arg1, %c0_i32 : i32
    %1 = arith.extui %0 : i1 to i32
    %c0_i32_0 = arith.constant 0 : i32
    %2 = arith.cmpi ne, %1, %c0_i32_0 : i32
    scf.if %2 {
      %c0_8 = arith.constant 0 : index
      %c0_9 = arith.constant 0 : index
      %10 = vector.load %arg2[%c0_8, %c0_9] : memref<8x32xf32, #tpu.memory_space<vmem>>, vector<8x32xf32>
      %c0_10 = arith.constant 0 : index
      %c0_11 = arith.constant 0 : index
      %11 = vector.load %arg3[%c0_10, %c0_11] : memref<32x128xf32, #tpu.memory_space<vmem>>, vector<32x128xf32>
      %cst_12 = arith.constant dense<0.000000e+00> : vector<8x128xf32>
      %12 = tpu.matmul %10, %11, %cst_12 {dimension_numbers = #tpu.dot_dimension_numbers<[1], [0], [0], [1], [0, 0, 1, 1], [], []>} : vector<8x32xf32>, vector<32x128xf32>, vector<8x128xf32> -> vector<8x128xf32>
      %c0_13 = arith.constant 0 : index
      %c0_14 = arith.constant 0 : index
      %13 = vector.load %arg4[%c0_13, %c0_14] : memref<1x128xf32, #tpu.memory_space<vmem>>, vector<1x128xf32>
      %14 = vector.broadcast %13 : vector<1x128xf32> to vector<8x128xf32>
      %15 = arith.addf %12, %14 : vector<8x128xf32>
      %c0_15 = arith.constant 0 : index
      %c0_16 = arith.constant 0 : index
      %16 = vector.load %arg8[%c0_15, %c0_16] : memref<8x128xf32, #tpu.memory_space<vmem>>, vector<8x128xf32>
      tpu.vector_store %arg8[%c0_15, %c0_16], %15 {strides = array<i32>} : memref<8x128xf32, #tpu.memory_space<vmem>>, vector<8x128xf32>,
    } else {
    }
    %c0 = arith.constant 0 : index
    %c0_1 = arith.constant 0 : index
    %3 = vector.load %arg8[%c0, %c0_1] : memref<8x128xf32, #tpu.memory_space<vmem>>, vector<8x128xf32>
    %c0_2 = arith.constant 0 : index
    %c0_3 = arith.constant 0 : index
    %4 = vector.load %arg5[%c0_2, %c0_3] : memref<128x128xf32, #tpu.memory_space<vmem>>, vector<128x128xf32>
    %cst = arith.constant dense<0.000000e+00> : vector<8x128xf32>
    %5 = tpu.matmul %3, %4, %cst {dimension_numbers = #tpu.dot_dimension_numbers<[1], [0], [0], [1], [0, 0, 1, 1], [], []>} : vector<8x128xf32>, vector<128x128xf32>, vector<8x128xf32> -> vector<8x128xf32>
    %c0_4 = arith.constant 0 : index
    %c0_5 = arith.constant 0 : index
    %6 = vector.load %arg6[%c0_4, %c0_5] : memref<1x128xf32, #tpu.memory_space<vmem>>, vector<1x128xf32>
    %7 = vector.broadcast %6 : vector<1x128xf32> to vector<8x128xf32>
    %8 = arith.addf %5, %7 : vector<8x128xf32>
    %c0_6 = arith.constant 0 : index
    %c0_7 = arith.constant 0 : index
    %9 = vector.load %arg7[%c0_6, %c0_7] : memref<8x128xf32, #tpu.memory_space<vmem>>, vector<8x128xf32>
    tpu.vector_store %arg7[%c0_6, %c0_7], %8 {strides = array<i32>} : memref<8x128xf32, #tpu.memory_space<vmem>>, vector<8x128xf32>,
    return
  }
  func.func @transform_0(%arg0: i32, %arg1: i32) -> (i32, i32) {
    %c0_i32 = arith.constant 0 : i32
    %c0_i32_0 = arith.constant 0 : i32
    return %arg0, %c0_i32 : i32, i32
  }
  func.func @transform_1(%arg0: i32, %arg1: i32) -> (i32, i32) {
    %c0_i32 = arith.constant 0 : i32
    %c0_i32_0 = arith.constant 0 : i32
    %c0_i32_1 = arith.constant 0 : i32
    return %c0_i32, %c0_i32_0 : i32, i32
  }
  func.func @transform_2(%arg0: i32, %arg1: i32) -> (i32, i32) {
    %c0_i32 = arith.constant 0 : i32
    %c0_i32_0 = arith.constant 0 : i32
    %c0_i32_1 = arith.constant 0 : i32
    return %c0_i32, %c0_i32_0 : i32, i32
  }
  func.func @transform_3(%arg0: i32, %arg1: i32) -> (i32, i32) {
    %c0_i32 = arith.constant 0 : i32
    %c0_i32_0 = arith.constant 0 : i32
    return %c0_i32, %arg1 : i32, i32
  }
  func.func @transform_4(%arg0: i32, %arg1: i32) -> (i32, i32) {
    %c0_i32 = arith.constant 0 : i32
    %c0_i32_0 = arith.constant 0 : i32
    return %c0_i32, %arg1 : i32, i32
  }
  func.func @transform_5(%arg0: i32, %arg1: i32) -> (i32, i32) {
    %c0_i32 = arith.constant 0 : i32
    return %arg0, %arg1 : i32, i32
  }
}

module attributes {stable_mosaic.version = 11 : i64} {
  func.func @dae_forward_kernel(%arg0: i32, %arg1: i32, %arg2: memref<8x32xf32, #tpu.memory_space<vmem>>, %arg3: memref<32x128xf32, #tpu.memory_space<vmem>>, %arg4: memref<1x128xf32, #tpu.memory_space<vmem>>, %arg5: memref<128x128xf32, #tpu.memory_space<vmem>>, %arg6: memref<1x128xf32, #tpu.memory_space<vmem>>, %arg7: memref<8x128xf32, #tpu.memory_space<vmem>>, %arg8: memref<8x128xf32, #tpu.memory_space<vmem>>) attributes {dimension_semantics = [#tpu.dimension_semantics<parallel>, #tpu.dimension_semantics<arbitrary>], iteration_bounds = array<i64: 1, 1>, scalar_prefetch = 0 : i64, scratch_operands = 1 : i64, tpu.core_type = #tpu.core_type<tc>, window_params = [{transform_indices = @transform_0, window_bounds = array<i64: 8, 32>}, {pipeline_mode = #tpu.pipeline_mode<synchronous>, transform_indices = @transform_1, window_bounds = array<i64: 32, 128>}, {pipeline_mode = #tpu.pipeline_mode<synchronous>, transform_indices = @transform_2, window_bounds = array<i64: 1, 128>}, {transform_indices = @transform_3, window_bounds = array<i64: 128, 128>}, {transform_indices = @transform_4, window_bounds = array<i64: 1, 128>}, {transform_indices = @transform_5, window_bounds = array<i64: 8, 128>}]} {
    %c0_i32 = arith.constant 0 : i32
    %0 = arith.cmpi eq, %arg1, %c0_i32 : i32
    %1 = arith.extui %0 : i1 to i32
    %c0_i32_0 = arith.constant 0 : i32
    %2 = arith.cmpi ne, %1, %c0_i32_0 : i32
    scf.if %2 {
      %c0_8 = arith.constant 0 : index
      %c0_9 = arith.constant 0 : index
      %10 = vector.load %arg2[%c0_8, %c0_9] : memref<8x32xf32, #tpu.memory_space<vmem>>, vector<8x32xf32>
      %c0_10 = arith.constant 0 : index
      %c0_11 = arith.constant 0 : index
      %11 = vector.load %arg3[%c0_10, %c0_11] : memref<32x128xf32, #tpu.memory_space<vmem>>, vector<32x128xf32>
      %cst_12 = arith.constant dense<0.000000e+00> : vector<8x128xf32>
      %12 = tpu.matmul %10, %11, %cst_12 {dimension_numbers = #tpu.dot_dimension_numbers<[1], [0], [0], [1], [0, 0, 1, 1], [], []>} : vector<8x32xf32>, vector<32x128xf32>, vector<8x128xf32> -> vector<8x128xf32>
      %c0_13 = arith.constant 0 : index
      %c0_14 = arith.constant 0 : index
      %13 = vector.load %arg4[%c0_13, %c0_14] : memref<1x128xf32, #tpu.memory_space<vmem>>, vector<1x128xf32>
      %14 = vector.broadcast %13 : vector<1x128xf32> to vector<8x128xf32>
      %15 = arith.addf %12, %14 : vector<8x128xf32>
      %c0_15 = arith.constant 0 : index
      %c0_16 = arith.constant 0 : index
      %16 = vector.load %arg8[%c0_15, %c0_16] : memref<8x128xf32, #tpu.memory_space<vmem>>, vector<8x128xf32>
      tpu.vector_store %arg8[%c0_15, %c0_16], %15 {strides = array<i32>} : memref<8x128xf32, #tpu.memory_space<vmem>>, vector<8x128xf32>,
    } else {
    }
    %c0 = arith.constant 0 : index
    %c0_1 = arith.constant 0 : index
    %3 = vector.load %arg8[%c0, %c0_1] : memref<8x128xf32, #tpu.memory_space<vmem>>, vector<8x128xf32>
    %c0_2 = arith.constant 0 : index
    %c0_3 = arith.constant 0 : index
    %4 = vector.load %arg5[%c0_2, %c0_3] : memref<128x128xf32, #tpu.memory_space<vmem>>, vector<128x128xf32>
    %cst = arith.constant dense<0.000000e+00> : vector<8x128xf32>
    %5 = tpu.matmul %3, %4, %cst {dimension_numbers = #tpu.dot_dimension_numbers<[1], [0], [0], [1], [0, 0, 1, 1], [], []>} : vector<8x128xf32>, vector<128x128xf32>, vector<8x128xf32> -> vector<8x128xf32>
    %c0_4 = arith.constant 0 : index
    %c0_5 = arith.constant 0 : index
    %6 = vector.load %arg6[%c0_4, %c0_5] : memref<1x128xf32, #tpu.memory_space<vmem>>, vector<1x128xf32>
    %7 = vector.broadcast %6 : vector<1x128xf32> to vector<8x128xf32>
    %8 = arith.addf %5, %7 : vector<8x128xf32>
    %c0_6 = arith.constant 0 : index
    %c0_7 = arith.constant 0 : index
    %9 = vector.load %arg7[%c0_6, %c0_7] : memref<8x128xf32, #tpu.memory_space<vmem>>, vector<8x128xf32>
    tpu.vector_store %arg7[%c0_6, %c0_7], %8 {strides = array<i32>} : memref<8x128xf32, #tpu.memory_space<vmem>>, vector<8x128xf32>,
    return
  }
  func.func @transform_0(%arg0: i32, %arg1: i32) -> (i32, i32) {
    %c0_i32 = arith.constant 0 : i32
    %c0_i32_0 = arith.constant 0 : i32
    return %arg0, %c0_i32 : i32, i32
  }
  func.func @transform_1(%arg0: i32, %arg1: i32) -> (i32, i32) {
    %c0_i32 = arith.constant 0 : i32
    %c0_i32_0 = arith.constant 0 : i32
    %c0_i32_1 = arith.constant 0 : i32
    return %c0_i32, %c0_i32_0 : i32, i32
  }
  func.func @transform_2(%arg0: i32, %arg1: i32) -> (i32, i32) {
    %c0_i32 = arith.constant 0 : i32
    %c0_i32_0 = arith.constant 0 : i32
    %c0_i32_1 = arith.constant 0 : i32
    return %c0_i32, %c0_i32_0 : i32, i32
  }
  func.func @transform_3(%arg0: i32, %arg1: i32) -> (i32, i32) {
    %c0_i32 = arith.constant 0 : i32
    %c0_i32_0 = arith.constant 0 : i32
    return %c0_i32, %arg1 : i32, i32
  }
  func.func @transform_4(%arg0: i32, %arg1: i32) -> (i32, i32) {
    %c0_i32 = arith.constant 0 : i32
    %c0_i32_0 = arith.constant 0 : i32
    return %c0_i32, %arg1 : i32, i32
  }
  func.func @transform_5(%arg0: i32, %arg1: i32) -> (i32, i32) {
    %c0_i32 = arith.constant 0 : i32
    return %arg0, %arg1 : i32, i32
  }
}

</mosaic_0001>

<llo_original>
// kernel: tpu_custom_call.1
$region0: #{tpu_custom_call.1}
  #allocation0 [shape = 'u32[]', space=smem, size = 0x4, offset = 0x4, fixed_abs, tag = 'smem constant byte address 0x4 - core index']
  #allocation1 [shape = 'u32[72,128]{1,0:T(1,128)}', space=vmem, size = 0x9000, scoped, tag = 'internal scratch']
  #allocation2 [shape = 'f32[8,128]{1,0:T(8,128)}', space=vmem, size = 0x1000, scoped, tag = 'scratch operand']
  %s0 = inlined_call_operand.hbm [shape: f32[8,32], index: 0, kind: input, shape index: {}]
  %s1 = inlined_call_operand.hbm [shape: f32[32,128], index: 1, kind: input, shape index: {}]
  %s2 = inlined_call_operand.vmem [shape: f32[1,128], index: 2, kind: input, shape index: {}]
  %s3 = inlined_call_operand.hbm [shape: f32[128,128], index: 3, kind: input, shape index: {}]
  %s4 = inlined_call_operand.vmem [shape: f32[1,128], index: 4, kind: input, shape index: {}]
  %s5 = inlined_call_operand.hbm [shape: f32[8,128], index: 5, kind: output, shape index: {}]
  %s6 = sld [smem:[#allocation0]]
  $region46: #{tpu_custom_call.1} parent=0
    _
  %s8 = ssub.s32 1, %s6
  %s9 = scalar_select 0, %s8, %s6
  $region1: #{tpu_custom_call.1} parent=0
    #allocation3 [shape = 'u8[4096]{0}', space=vmem, size = 0x1000, scoped, tag = 'input window, operand 0, single buffered']
    #allocation4 [shape = 's32[1]{0}', space=sflag, size = 0x4, scoped, tag = 'scoped memory for tpu_custom_call.1']
    #allocation5 [shape = 's32[1]{0}', space=sflag, size = 0x4, scoped, tag = 'scoped memory for tpu_custom_call.1']
    #allocation6 [shape = 'u8[16384]{0}', space=vmem, size = 0x4000, scoped, tag = 'input window, operand 1, single buffered']
    #allocation7 [shape = 's32[1]{0}', space=sflag, size = 0x4, scoped, tag = 'scoped memory for tpu_custom_call.1']
    #allocation8 [shape = 'u8[65536]{0}', space=vmem, size = 0x10000, scoped, tag = 'input window, operand 3, single buffered']
    #allocation9 [shape = 'u8[4096]{0}', space=vmem, size = 0x1000, scoped, tag = 'output window, operand 0, single buffered']
    %10 = vsyncpa [#allocation4], 0
    %11 = vsyncpa [#allocation7], 0
    %12 = vsyncpa [#allocation5], 0
    // Predicated region
    $region2: #{tpu_custom_call.1} parent=1 // pred_check
      _
    $region3: #{tpu_custom_call.1} parent=1 // pred_check_branch
      %14 = sbr.rel (0) target = $region5
    $region4: #{tpu_custom_call.1} parent=1 // pred_region
      %16 = vsyncadd [#allocation4], 0
      %s18 = sshll.u32 %s0, 4
      %s19 = int_to_ptr.hbm [resolvable:$true] %s18
      %s20 = sshll.u32 [#allocation3], 4
      %s21 = int_to_ptr.vmem [resolvable:$true] %s20
      %23 = dma.hbm_to_vmem [thread:$0]  %s19, 128, %s21, [#allocation4]
    $region5: #{tpu_custom_call.1} parent=1 // pred_fallthru
      _
    // Predicated region
    $region6: #{tpu_custom_call.1} parent=1 // pred_check
      _
    $region7: #{tpu_custom_call.1} parent=1 // pred_check_branch
      %25 = sbr.rel (0) target = $region9
    $region8: #{tpu_custom_call.1} parent=1 // pred_region
      %27 = vsyncadd [#allocation7], 0
      %s28 = sshll.u32 %s1, 4
      %s29 = int_to_ptr.hbm [resolvable:$true] %s28
      %s30 = sshll.u32 [#allocation6], 4
      %s31 = int_to_ptr.vmem [resolvable:$true] %s30
      %36 = dma.hbm_to_vmem [thread:$0]  %s29, 512, %s31, [#allocation7], 128, 128, 8
    $region9: #{tpu_custom_call.1} parent=1 // pred_fallthru
      _
    // Predicated region
    $region10: #{tpu_custom_call.1} parent=1 // pred_check
      _
    $region11: #{tpu_custom_call.1} parent=1 // pred_check_branch
      %38 = sbr.rel (0) target = $region13
    $region12: #{tpu_custom_call.1} parent=1 // pred_region
      _
    $region13: #{tpu_custom_call.1} parent=1 // pred_fallthru
      _
    // Predicated region
    $region14: #{tpu_custom_call.1} parent=1 // pred_check
      _
    $region15: #{tpu_custom_call.1} parent=1 // pred_check_branch
      %40 = sbr.rel (0) target = $region17
    $region16: #{tpu_custom_call.1} parent=1 // pred_region
      %42 = vsyncadd [#allocation7], 0
      %s43 = sshll.u32 %s3, 4
      %s44 = int_to_ptr.hbm [resolvable:$true] %s43
      %s45 = sshll.u32 [#allocation8], 4
      %s46 = int_to_ptr.vmem [resolvable:$true] %s45
      %51 = dma.hbm_to_vmem [thread:$0]  %s44, 2048, %s46, [#allocation7], 128, 128, 8
    $region17: #{tpu_custom_call.1} parent=1 // pred_fallthru
      _
    // Predicated region
    $region18: #{tpu_custom_call.1} parent=1 // pred_check
      _
    $region19: #{tpu_custom_call.1} parent=1 // pred_check_branch
      %53 = sbr.rel (0) target = $region21
    $region20: #{tpu_custom_call.1} parent=1 // pred_region
      _
    $region21: #{tpu_custom_call.1} parent=1 // pred_fallthru
      _
    // Predicated region
    $region22: #{tpu_custom_call.1} parent=1 // pred_check
      _
    $region23: #{tpu_custom_call.1} parent=1 // pred_check_branch
      %55 = sbr.rel (0) target = $region25
    $region24: #{tpu_custom_call.1} parent=1 // pred_region
      %57 = dma.done [#allocation4], 128
    $region25: #{tpu_custom_call.1} parent=1 // pred_fallthru
      _
    // Predicated region
    $region26: #{tpu_custom_call.1} parent=1 // pred_check
      _
    $region27: #{tpu_custom_call.1} parent=1 // pred_check_branch
      %59 = sbr.rel (0) target = $region29
    $region28: #{tpu_custom_call.1} parent=1 // pred_region
      %61 = dma.done [#allocation7], 512
    $region29: #{tpu_custom_call.1} parent=1 // pred_fallthru
      _
    // Predicated region
    $region30: #{tpu_custom_call.1} parent=1 // pred_check
      _
    $region31: #{tpu_custom_call.1} parent=1 // pred_check_branch
      %63 = sbr.rel (0) target = $region33
    $region32: #{tpu_custom_call.1} parent=1 // pred_region
      %65 = dma.done [#allocation7], 2048
    $region33: #{tpu_custom_call.1} parent=1 // pred_fallthru
      _
    %p66 = scmp.eq.s32.totalorder 0, 0
    // Predicated region
    $region34: #{tpu_custom_call.1} parent=1 // pred_check
      %p67 = pneg %p66
    $region35: #{tpu_custom_call.1} parent=1 // pred_check_branch
      %69 = sbr.rel (%p67) target = $region37
    $region36: #{tpu_custom_call.1} parent=1 // pred_region
      %v70 = vld [vmem:[#allocation3] sm:$0xff]
      %v71 = vld [vmem:[#allocation6] sm:$0xff]
      %v72 = vld [vmem:[#allocation6 + $0x8] sm:$0xff]
      %v73 = vld [vmem:[#allocation6 + $0x10] sm:$0xff]
      %v74 = vld [vmem:[#allocation6 + $0x18] sm:$0xff]
      %v75 = vld [vmem:[%s2] sm:$0x1]
      %v77 = vperm.slane %v75, 0
      %vm79 = vcmask 261120
      %v81 = vsel %vm79, %v70, 0
      %83 = vmatpush.msra.mxu0 0.0
      %84 = vmatpush.msra.mxu0 0.0
      %85 = vmatpush.msra.mxu0 0.0
      %86 = vmatpush.msra.mxu0 0.0
      %87 = vmatpush.msra.mxu0 0.0
      %88 = vmatpush.msra.mxu0 0.0
      %89 = vmatpush.msra.mxu0 0.0
      %90 = vmatpush.msra.mxu0 0.0
      %91 = vmatpush.msra.mxu0 0.0
      %92 = vmatpush.msra.mxu0 0.0
      %93 = vmatpush.msra.mxu0 0.0
      %94 = vmatpush.msra.mxu0 0.0
      %95 = vmatpush.msra.mxu0 %v74
      %96 = vmatpush.msra.mxu0 %v73
      %97 = vmatpush.msra.mxu0 %v72
      %98 = vmatpush.msra.mxu0 %v71
      %99 = vmatmul.f32.gmra.mxu0 %v81
      %v100 = vpop.f32.mrf.mxu0
      %v101 = vadd.f32 %v77, %v100
      %102 = vdwg.mxu0
      %103 = vst [vmem:[#allocation2] sm:$0xff] %v101
    $region37: #{tpu_custom_call.1} parent=1 // pred_fallthru
      _
    %v104 = vld [vmem:[#allocation2] sm:$0xff]
    %v105 = vld [vmem:[#allocation8] sm:$0xff]
    %v106 = vld [vmem:[#allocation8 + $0x8] sm:$0xff]
    %v107 = vld [vmem:[#allocation8 + $0x10] sm:$0xff]
    %v108 = vld [vmem:[#allocation8 + $0x18] sm:$0xff]
    %v109 = vld [vmem:[#allocation8 + $0x20] sm:$0xff]
    %v110 = vld [vmem:[#allocation8 + $0x28] sm:$0xff]
    %v111 = vld [vmem:[#allocation8 + $0x30] sm:$0xff]
    %v112 = vld [vmem:[#allocation8 + $0x38] sm:$0xff]
    %v113 = vld [vmem:[#allocation8 + $0x40] sm:$0xff]
    %v114 = vld [vmem:[#allocation8 + $0x48] sm:$0xff]
    %v115 = vld [vmem:[#allocation8 + $0x50] sm:$0xff]
    %v116 = vld [vmem:[#allocation8 + $0x58] sm:$0xff]
    %v117 = vld [vmem:[#allocation8 + $0x60] sm:$0xff]
    %v118 = vld [vmem:[#allocation8 + $0x68] sm:$0xff]
    %v119 = vld [vmem:[#allocation8 + $0x70] sm:$0xff]
    %v120 = vld [vmem:[#allocation8 + $0x78] sm:$0xff]
    %v121 = vld [vmem:[%s4] sm:$0x1]
    %v123 = vperm.slane %v121, 0
    %125 = vmatpush.msra.mxu0 %v120
    %126 = vmatpush.msra.mxu0 %v119
    %127 = vmatpush.msra.mxu0 %v118
    %128 = vmatpush.msra.mxu0 %v117
    %129 = vmatpush.msra.mxu0 %v116
    %130 = vmatpush.msra.mxu0 %v115
    %131 = vmatpush.msra.mxu0 %v114
    %132 = vmatpush.msra.mxu0 %v113
    %133 = vmatpush.msra.mxu0 %v112
    %134 = vmatpush.msra.mxu0 %v111
    %135 = vmatpush.msra.mxu0 %v110
    %136 = vmatpush.msra.mxu0 %v109
    %137 = vmatpush.msra.mxu0 %v108
    %138 = vmatpush.msra.mxu0 %v107
    %139 = vmatpush.msra.mxu0 %v106
    %140 = vmatpush.msra.mxu0 %v105
    %141 = vmatmul.f32.gmra.mxu0 %v104
    %v142 = vpop.f32.mrf.mxu0
    %v143 = vadd.f32 %v123, %v142
    %144 = vdwg.mxu0
    %145 = vst [vmem:[#allocation9] sm:$0xff] %v143
    // Predicated region
    $region38: #{tpu_custom_call.1} parent=1 // pred_check
      _
    $region39: #{tpu_custom_call.1} parent=1 // pred_check_branch
      %147 = sbr.rel (0) target = $region41
    $region40: #{tpu_custom_call.1} parent=1 // pred_region
      %149 = vsyncadd [#allocation5], 0
      %s151 = sshll.u32 [#allocation9], 4
      %s152 = int_to_ptr.vmem [resolvable:$true] %s151
      %s153 = sshll.u32 %s5, 4
      %s154 = int_to_ptr.hbm [resolvable:$true] %s153
      %156 = dma.vmem_to_hbm [thread:$0]  %s152, 128, %s154, [#allocation5]
    $region41: #{tpu_custom_call.1} parent=1 // pred_fallthru
      _
    // Predicated region
    $region42: #{tpu_custom_call.1} parent=1 // pred_check
      _
    $region43: #{tpu_custom_call.1} parent=1 // pred_check_branch
      %158 = sbr.rel (0) target = $region45
    $region44: #{tpu_custom_call.1} parent=1 // pred_region
      %160 = dma.done [#allocation5], 128
    $region45: #{tpu_custom_call.1} parent=1 // pred_fallthru
      _
    %161 = vsyncpa [#allocation4], 1
    %162 = vsyncpa [#allocation7], 1
    %163 = vsyncpa [#allocation5], 1

// kernel: tpu_custom_call.1
$region0: #{tpu_custom_call.1}
  #allocation0 [shape = 'u32[]', space=smem, size = 0x4, offset = 0x4, fixed_abs, tag = 'smem constant byte address 0x4 - core index']
  #allocation1 [shape = 'u32[72,128]{1,0:T(1,128)}', space=vmem, size = 0x9000, scoped, tag = 'internal scratch']
  #allocation2 [shape = 'f32[8,128]{1,0:T(8,128)}', space=vmem, size = 0x1000, scoped, tag = 'scratch operand']
  %s0 = inlined_call_operand.hbm [shape: f32[8,32], index: 0, kind: input, shape index: {}]
  %s1 = inlined_call_operand.hbm [shape: f32[32,128], index: 1, kind: input, shape index: {}]
  %s2 = inlined_call_operand.vmem [shape: f32[1,128], index: 2, kind: input, shape index: {}]
  %s3 = inlined_call_operand.hbm [shape: f32[128,128], index: 3, kind: input, shape index: {}]
  %s4 = inlined_call_operand.vmem [shape: f32[1,128], index: 4, kind: input, shape index: {}]
  %s5 = inlined_call_operand.hbm [shape: f32[8,128], index: 5, kind: output, shape index: {}]
  %s6 = sld [smem:[#allocation0]]
  $region46: #{tpu_custom_call.1} parent=0
    _
  %s8 = ssub.s32 1, %s6
  %s9 = scalar_select 0, %s8, %s6
  $region1: #{tpu_custom_call.1} parent=0
    #allocation3 [shape = 'u8[4096]{0}', space=vmem, size = 0x1000, scoped, tag = 'input window, operand 0, single buffered']
    #allocation4 [shape = 's32[1]{0}', space=sflag, size = 0x4, scoped, tag = 'scoped memory for tpu_custom_call.1']
    #allocation5 [shape = 's32[1]{0}', space=sflag, size = 0x4, scoped, tag = 'scoped memory for tpu_custom_call.1']
    #allocation6 [shape = 'u8[16384]{0}', space=vmem, size = 0x4000, scoped, tag = 'input window, operand 1, single buffered']
    #allocation7 [shape = 's32[1]{0}', space=sflag, size = 0x4, scoped, tag = 'scoped memory for tpu_custom_call.1']
    #allocation8 [shape = 'u8[65536]{0}', space=vmem, size = 0x10000, scoped, tag = 'input window, operand 3, single buffered']
    #allocation9 [shape = 'u8[4096]{0}', space=vmem, size = 0x1000, scoped, tag = 'output window, operand 0, single buffered']
    %10 = vsyncpa [#allocation4], 0
    %11 = vsyncpa [#allocation7], 0
    %12 = vsyncpa [#allocation5], 0
    // Predicated region
    $region2: #{tpu_custom_call.1} parent=1 // pred_check
      _
    $region3: #{tpu_custom_call.1} parent=1 // pred_check_branch
      %14 = sbr.rel (0) target = $region5
    $region4: #{tpu_custom_call.1} parent=1 // pred_region
      %16 = vsyncadd [#allocation4], 0
      %s18 = sshll.u32 %s0, 4
      %s19 = int_to_ptr.hbm [resolvable:$true] %s18
      %s20 = sshll.u32 [#allocation3], 4
      %s21 = int_to_ptr.vmem [resolvable:$true] %s20
      %23 = dma.hbm_to_vmem [thread:$0]  %s19, 128, %s21, [#allocation4]
    $region5: #{tpu_custom_call.1} parent=1 // pred_fallthru
      _
    // Predicated region
    $region6: #{tpu_custom_call.1} parent=1 // pred_check
      _
    $region7: #{tpu_custom_call.1} parent=1 // pred_check_branch
      %25 = sbr.rel (0) target = $region9
    $region8: #{tpu_custom_call.1} parent=1 // pred_region
      %27 = vsyncadd [#allocation7], 0
      %s28 = sshll.u32 %s1, 4
      %s29 = int_to_ptr.hbm [resolvable:$true] %s28
      %s30 = sshll.u32 [#allocation6], 4
      %s31 = int_to_ptr.vmem [resolvable:$true] %s30
      %36 = dma.hbm_to_vmem [thread:$0]  %s29, 512, %s31, [#allocation7], 128, 128, 8
    $region9: #{tpu_custom_call.1} parent=1 // pred_fallthru
      _
    // Predicated region
    $region10: #{tpu_custom_call.1} parent=1 // pred_check
      _
    $region11: #{tpu_custom_call.1} parent=1 // pred_check_branch
      %38 = sbr.rel (0) target = $region13
    $region12: #{tpu_custom_call.1} parent=1 // pred_region
      _
    $region13: #{tpu_custom_call.1} parent=1 // pred_fallthru
      _
    // Predicated region
    $region14: #{tpu_custom_call.1} parent=1 // pred_check
      _
    $region15: #{tpu_custom_call.1} parent=1 // pred_check_branch
      %40 = sbr.rel (0) target = $region17
    $region16: #{tpu_custom_call.1} parent=1 // pred_region
      %42 = vsyncadd [#allocation7], 0
      %s43 = sshll.u32 %s3, 4
      %s44 = int_to_ptr.hbm [resolvable:$true] %s43
      %s45 = sshll.u32 [#allocation8], 4
      %s46 = int_to_ptr.vmem [resolvable:$true] %s45
      %51 = dma.hbm_to_vmem [thread:$0]  %s44, 2048, %s46, [#allocation7], 128, 128, 8
    $region17: #{tpu_custom_call.1} parent=1 // pred_fallthru
      _
    // Predicated region
    $region18: #{tpu_custom_call.1} parent=1 // pred_check
      _
    $region19: #{tpu_custom_call.1} parent=1 // pred_check_branch
      %53 = sbr.rel (0) target = $region21
    $region20: #{tpu_custom_call.1} parent=1 // pred_region
      _
    $region21: #{tpu_custom_call.1} parent=1 // pred_fallthru
      _
    // Predicated region
    $region22: #{tpu_custom_call.1} parent=1 // pred_check
      _
    $region23: #{tpu_custom_call.1} parent=1 // pred_check_branch
      %55 = sbr.rel (0) target = $region25
    $region24: #{tpu_custom_call.1} parent=1 // pred_region
      %57 = dma.done [#allocation4], 128
    $region25: #{tpu_custom_call.1} parent=1 // pred_fallthru
      _
    // Predicated region
    $region26: #{tpu_custom_call.1} parent=1 // pred_check
      _
    $region27: #{tpu_custom_call.1} parent=1 // pred_check_branch
      %59 = sbr.rel (0) target = $region29
    $region28: #{tpu_custom_call.1} parent=1 // pred_region
      %61 = dma.done [#allocation7], 512
    $region29: #{tpu_custom_call.1} parent=1 // pred_fallthru
      _
    // Predicated region
    $region30: #{tpu_custom_call.1} parent=1 // pred_check
      _
    $region31: #{tpu_custom_call.1} parent=1 // pred_check_branch
      %63 = sbr.rel (0) target = $region33
    $region32: #{tpu_custom_call.1} parent=1 // pred_region
      %65 = dma.done [#allocation7], 2048
    $region33: #{tpu_custom_call.1} parent=1 // pred_fallthru
      _
    %p66 = scmp.eq.s32.totalorder 0, 0
    // Predicated region
    $region34: #{tpu_custom_call.1} parent=1 // pred_check
      %p67 = pneg %p66
    $region35: #{tpu_custom_call.1} parent=1 // pred_check_branch
      %69 = sbr.rel (%p67) target = $region37
    $region36: #{tpu_custom_call.1} parent=1 // pred_region
      %v70 = vld [vmem:[#allocation3] sm:$0xff]
      %v71 = vld [vmem:[#allocation6] sm:$0xff]
      %v72 = vld [vmem:[#allocation6 + $0x8] sm:$0xff]
      %v73 = vld [vmem:[#allocation6 + $0x10] sm:$0xff]
      %v74 = vld [vmem:[#allocation6 + $0x18] sm:$0xff]
      %v75 = vld [vmem:[%s2] sm:$0x1]
      %v77 = vperm.slane %v75, 0
      %vm79 = vcmask 261120
      %v81 = vsel %vm79, %v70, 0
      %83 = vmatpush.msra.mxu0 0.0
      %84 = vmatpush.msra.mxu0 0.0
      %85 = vmatpush.msra.mxu0 0.0
      %86 = vmatpush.msra.mxu0 0.0
      %87 = vmatpush.msra.mxu0 0.0
      %88 = vmatpush.msra.mxu0 0.0
      %89 = vmatpush.msra.mxu0 0.0
      %90 = vmatpush.msra.mxu0 0.0
      %91 = vmatpush.msra.mxu0 0.0
      %92 = vmatpush.msra.mxu0 0.0
      %93 = vmatpush.msra.mxu0 0.0
      %94 = vmatpush.msra.mxu0 0.0
      %95 = vmatpush.msra.mxu0 %v74
      %96 = vmatpush.msra.mxu0 %v73
      %97 = vmatpush.msra.mxu0 %v72
      %98 = vmatpush.msra.mxu0 %v71
      %99 = vmatmul.f32.gmra.mxu0 %v81
      %v100 = vpop.f32.mrf.mxu0
      %v101 = vadd.f32 %v77, %v100
      %102 = vdwg.mxu0
      %103 = vst [vmem:[#allocation2] sm:$0xff] %v101
    $region37: #{tpu_custom_call.1} parent=1 // pred_fallthru
      _
    %v104 = vld [vmem:[#allocation2] sm:$0xff]
    %v105 = vld [vmem:[#allocation8] sm:$0xff]
    %v106 = vld [vmem:[#allocation8 + $0x8] sm:$0xff]
    %v107 = vld [vmem:[#allocation8 + $0x10] sm:$0xff]
    %v108 = vld [vmem:[#allocation8 + $0x18] sm:$0xff]
    %v109 = vld [vmem:[#allocation8 + $0x20] sm:$0xff]
    %v110 = vld [vmem:[#allocation8 + $0x28] sm:$0xff]
    %v111 = vld [vmem:[#allocation8 + $0x30] sm:$0xff]
    %v112 = vld [vmem:[#allocation8 + $0x38] sm:$0xff]
    %v113 = vld [vmem:[#allocation8 + $0x40] sm:$0xff]
    %v114 = vld [vmem:[#allocation8 + $0x48] sm:$0xff]
    %v115 = vld [vmem:[#allocation8 + $0x50] sm:$0xff]
    %v116 = vld [vmem:[#allocation8 + $0x58] sm:$0xff]
    %v117 = vld [vmem:[#allocation8 + $0x60] sm:$0xff]
    %v118 = vld [vmem:[#allocation8 + $0x68] sm:$0xff]
    %v119 = vld [vmem:[#allocation8 + $0x70] sm:$0xff]
    %v120 = vld [vmem:[#allocation8 + $0x78] sm:$0xff]
    %v121 = vld [vmem:[%s4] sm:$0x1]
    %v123 = vperm.slane %v121, 0
    %125 = vmatpush.msra.mxu0 %v120
    %126 = vmatpush.msra.mxu0 %v119
    %127 = vmatpush.msra.mxu0 %v118
    %128 = vmatpush.msra.mxu0 %v117
    %129 = vmatpush.msra.mxu0 %v116
    %130 = vmatpush.msra.mxu0 %v115
    %131 = vmatpush.msra.mxu0 %v114
    %132 = vmatpush.msra.mxu0 %v113
    %133 = vmatpush.msra.mxu0 %v112
    %134 = vmatpush.msra.mxu0 %v111
    %135 = vmatpush.msra.mxu0 %v110
    %136 = vmatpush.msra.mxu0 %v109
    %137 = vmatpush.msra.mxu0 %v108
    %138 = vmatpush.msra.mxu0 %v107
    %139 = vmatpush.msra.mxu0 %v106
    %140 = vmatpush.msra.mxu0 %v105
    %141 = vmatmul.f32.gmra.mxu0 %v104
    %v142 = vpop.f32.mrf.mxu0
    %v143 = vadd.f32 %v123, %v142
    %144 = vdwg.mxu0
    %145 = vst [vmem:[#allocation9] sm:$0xff] %v143
    // Predicated region
    $region38: #{tpu_custom_call.1} parent=1 // pred_check
      _
    $region39: #{tpu_custom_call.1} parent=1 // pred_check_branch
      %147 = sbr.rel (0) target = $region41
    $region40: #{tpu_custom_call.1} parent=1 // pred_region
      %149 = vsyncadd [#allocation5], 0
      %s151 = sshll.u32 [#allocation9], 4
      %s152 = int_to_ptr.vmem [resolvable:$true] %s151
      %s153 = sshll.u32 %s5, 4
      %s154 = int_to_ptr.hbm [resolvable:$true] %s153
      %156 = dma.vmem_to_hbm [thread:$0]  %s152, 128, %s154, [#allocation5]
    $region41: #{tpu_custom_call.1} parent=1 // pred_fallthru
      _
    // Predicated region
    $region42: #{tpu_custom_call.1} parent=1 // pred_check
      _
    $region43: #{tpu_custom_call.1} parent=1 // pred_check_branch
      %158 = sbr.rel (0) target = $region45
    $region44: #{tpu_custom_call.1} parent=1 // pred_region
      %160 = dma.done [#allocation5], 128
    $region45: #{tpu_custom_call.1} parent=1 // pred_fallthru
      _
    %161 = vsyncpa [#allocation4], 1
    %162 = vsyncpa [#allocation7], 1
    %163 = vsyncpa [#allocation5], 1

</llo_original>
